<compile_context>
chip_gen: v6e
topology: v6e:2x2x1
jax: 0.10.0
libtpu: 0.0.40
codegen_flags: <defaults>
</compile_context>

<pallas_src>
import jax
import jax.numpy as jnp
from jax.experimental import pallas as pl
from jax.experimental.pallas import tpu as pltpu

N_EMBED = 60
LANE = 128


def _round_up(n, m):
    return ((n + m - 1) // m) * m


def ffwd_kernel(x_ref, w1_ref, b1_ref, w2_ref, b2_ref, o_ref):
    # x_ref: (tm, C)   any float dtype
    # w1   : (C, Hp)   bf16        b1: (1, Hp) f32
    # w2   : (Hp, C)   bf16        b2: (1, C)  f32
    # o    : (tm, C)   f32
    x = x_ref[...].astype(jnp.bfloat16)

    # Linear 1: bf16 MXU operands, f32 accumulate; bias + ReLU in f32.
    h = jnp.dot(x, w1_ref[...], preferred_element_type=jnp.float32) + b1_ref[...]
    h = jnp.maximum(h, 0.0)

    # Linear 2.
    y = jnp.dot(h.astype(jnp.bfloat16), w2_ref[...],
                preferred_element_type=jnp.float32) + b2_ref[...]

    # TODO(synk): nn.Dropout(0.2) omitted (eval-mode identity); training mode
    # would need pltpu.prng_seed/prng_random_bits + 1/(1-p) scaling in-kernel.
    o_ref[...] = y.astype(o_ref.dtype)


def prepare_params(params):
    """One-time (per-layer) weight padding/casting, hoisted off the hot path."""
    w1, b1, w2, b2 = params["w1"], params["b1"], params["w2"], params["b2"]
    C, H = w1.shape
    assert w2.shape == (H, C)
    Hp = _round_up(H, LANE)   # hidden lane width padded: 240 -> 256

    w1p = jnp.zeros((C, Hp), jnp.bfloat16).at[:, :H].set(w1.astype(jnp.bfloat16))
    b1p = jnp.zeros((1, Hp), jnp.float32).at[:, :H].set(
        b1.reshape(1, H).astype(jnp.float32))
    w2p = jnp.zeros((Hp, C), jnp.bfloat16).at[:H, :].set(w2.astype(jnp.bfloat16))
    b2p = b2.reshape(1, C).astype(jnp.float32)
    return {"w1p": w1p, "b1p": b1p, "w2p": w2p, "b2p": b2p,
            "C": C, "H": H, "Hp": Hp}


def feedforward(x, prepared, *, max_rows_per_step=2048):
    """y = ReLU(x @ W1 + b1) @ W2 + b2 over the last axis of x (dropout = id)."""
    orig_shape = x.shape
    C = orig_shape[-1]
    assert C == prepared["C"]
    Hp = prepared["Hp"]

    # Flatten leading dims; NO lane padding, NO dtype-change pass over HBM.
    xf = x.reshape(-1, C)
    N = xf.shape[0]

    # Big row tiles (multiple of 8); single grid step for small N, many
    # "parallel" steps only when N is large (so a 2-TC v7x still gets work).
    tm = min(max_rows_per_step, _round_up(N, 8))
    grid = pl.cdiv(N, tm)

    out = pl.pallas_call(
        ffwd_kernel,
        out_shape=jax.ShapeDtypeStruct((N, C), jnp.float32),
        grid_spec=pltpu.PrefetchScalarGridSpec(
            num_scalar_prefetch=0,
            grid=(grid,),
            in_specs=[
                pl.BlockSpec((tm, C), lambda i: (i, 0)),    # x rows (unpadded lanes)
                pl.BlockSpec((C, Hp), lambda i: (0, 0)),    # W1 (whole, resident)
                pl.BlockSpec((1, Hp), lambda i: (0, 0)),    # b1
                pl.BlockSpec((Hp, C), lambda i: (0, 0)),    # W2 (whole, resident)
                pl.BlockSpec((1, C),  lambda i: (0, 0)),    # b2
            ],
            out_specs=pl.BlockSpec((tm, C), lambda i: (i, 0)),
        ),
        compiler_params=pltpu.CompilerParams(
            dimension_semantics=("parallel",)),
    )(xf, prepared["w1p"], prepared["b1p"], prepared["w2p"], prepared["b2p"])

    return out.reshape(orig_shape)


def reference_forward(x, params):
    """Pure-JAX reference (eval mode; dropout = identity). Matmul operands are
    rounded to bf16 to mirror the kernel's MXU dtype; accumulation is f32."""
    def bf16(a):
        return a.astype(jnp.bfloat16).astype(jnp.float32)
    h = jnp.maximum(bf16(x) @ bf16(params["w1"]) + params["b1"], 0.0)
    return bf16(h) @ bf16(params["w2"]) + params["b2"]


def init_params(key, n_embed=N_EMBED):
    k1, k2, k3, k4 = jax.random.split(key, 4)
    s = 0.05
    return {
        "w1": s * jax.random.normal(k1, (n_embed, 4 * n_embed), jnp.float32),
        "b1": s * jax.random.normal(k2, (4 * n_embed,), jnp.float32),
        "w2": s * jax.random.normal(k3, (4 * n_embed, n_embed), jnp.float32),
        "b2": s * jax.random.normal(k4, (n_embed,), jnp.float32),
    }


if __name__ == "__main__":
    key = jax.random.PRNGKey(0)
    k_x, k_p = jax.random.split(key)

    B, T, C = 2, 8, N_EMBED
    x = jax.random.normal(k_x, (B, T, C), jnp.float32)
    params = init_params(k_p)
    prepared = prepare_params(params)   # padded/cast once, reused every call

    out = jax.block_until_ready(feedforward(x, prepared))
    ref = reference_forward(x, params)

    assert out.shape == (B, T, C)
    max_err = jnp.max(jnp.abs(out - ref))
    assert jnp.allclose(out, ref, rtol=2e-3, atol=2e-3), f"max abs err {max_err}"

    print("KERNEL_OK")
</pallas_src>

<mosaic_0001>
module attributes {stable_mosaic.version = 11 : i64} {
  func.func @ffwd_kernel(%arg0: i32, %arg1: memref<16x60xf32, #tpu.memory_space<vmem>>, %arg2: memref<60x256xbf16, #tpu.memory_space<vmem>>, %arg3: memref<1x256xf32, #tpu.memory_space<vmem>>, %arg4: memref<256x60xbf16, #tpu.memory_space<vmem>>, %arg5: memref<1x60xf32, #tpu.memory_space<vmem>>, %arg6: memref<16x60xf32, #tpu.memory_space<vmem>>) attributes {dimension_semantics = [#tpu.dimension_semantics<parallel>], iteration_bounds = array<i64: 1>, scalar_prefetch = 0 : i64, scratch_operands = 0 : i64, tpu.core_type = #tpu.core_type<tc>, window_params = [{transform_indices = @transform_0, window_bounds = array<i64: 16, 60>}, {pipeline_mode = #tpu.pipeline_mode<synchronous>, transform_indices = @transform_1, window_bounds = array<i64: 60, 256>}, {pipeline_mode = #tpu.pipeline_mode<synchronous>, transform_indices = @transform_2, window_bounds = array<i64: 1, 256>}, {pipeline_mode = #tpu.pipeline_mode<synchronous>, transform_indices = @transform_3, window_bounds = array<i64: 256, 60>}, {pipeline_mode = #tpu.pipeline_mode<synchronous>, transform_indices = @transform_4, window_bounds = array<i64: 1, 60>}, {transform_indices = @transform_5, window_bounds = array<i64: 16, 60>}]} {
    %c0 = arith.constant 0 : index
    %c0_0 = arith.constant 0 : index
    %0 = vector.load %arg1[%c0, %c0_0] : memref<16x60xf32, #tpu.memory_space<vmem>>, vector<16x60xf32>
    %1 = arith.truncf %0 : vector<16x60xf32> to vector<16x60xbf16>
    %c0_1 = arith.constant 0 : index
    %c0_2 = arith.constant 0 : index
    %2 = vector.load %arg2[%c0_1, %c0_2] : memref<60x256xbf16, #tpu.memory_space<vmem>>, vector<60x256xbf16>
    %cst = arith.constant dense<0.000000e+00> : vector<16x256xf32>
    %3 = tpu.matmul %1, %2, %cst {dimension_numbers = #tpu.dot_dimension_numbers<[1], [0], [0], [1], [0, 0, 1, 1], [], []>} : vector<16x60xbf16>, vector<60x256xbf16>, vector<16x256xf32> -> vector<16x256xf32>
    %c0_3 = arith.constant 0 : index
    %c0_4 = arith.constant 0 : index
    %4 = vector.load %arg3[%c0_3, %c0_4] : memref<1x256xf32, #tpu.memory_space<vmem>>, vector<1x256xf32>
    %5 = vector.broadcast %4 : vector<1x256xf32> to vector<16x256xf32>
    %6 = arith.addf %3, %5 : vector<16x256xf32>
    %cst_5 = arith.constant 0.000000e+00 : f32
    %7 = vector.broadcast %cst_5 : f32 to vector<16x256xf32>
    %8 = arith.maximumf %6, %7 : vector<16x256xf32>
    %9 = arith.truncf %8 : vector<16x256xf32> to vector<16x256xbf16>
    %c0_6 = arith.constant 0 : index
    %c0_7 = arith.constant 0 : index
    %10 = vector.load %arg4[%c0_6, %c0_7] : memref<256x60xbf16, #tpu.memory_space<vmem>>, vector<256x60xbf16>
    %cst_8 = arith.constant dense<0.000000e+00> : vector<16x60xf32>
    %11 = tpu.matmul %9, %10, %cst_8 {dimension_numbers = #tpu.dot_dimension_numbers<[1], [0], [0], [1], [0, 0, 1, 1], [], []>} : vector<16x256xbf16>, vector<256x60xbf16>, vector<16x60xf32> -> vector<16x60xf32>
    %c0_9 = arith.constant 0 : index
    %c0_10 = arith.constant 0 : index
    %12 = vector.load %arg5[%c0_9, %c0_10] : memref<1x60xf32, #tpu.memory_space<vmem>>, vector<1x60xf32>
    %13 = vector.broadcast %12 : vector<1x60xf32> to vector<16x60xf32>
    %14 = arith.addf %11, %13 : vector<16x60xf32>
    %c0_11 = arith.constant 0 : index
    %c0_12 = arith.constant 0 : index
    %15 = vector.load %arg6[%c0_11, %c0_12] : memref<16x60xf32, #tpu.memory_space<vmem>>, vector<16x60xf32>
    tpu.vector_store %arg6[%c0_11, %c0_12], %14 {strides = array<i32>} : memref<16x60xf32, #tpu.memory_space<vmem>>, vector<16x60xf32>,
    return
  }
  func.func @transform_0(%arg0: i32) -> (i32, i32) {
    %c0_i32 = arith.constant 0 : i32
    %c0_i32_0 = arith.constant 0 : i32
    return %arg0, %c0_i32 : i32, i32
  }
  func.func @transform_1(%arg0: i32) -> (i32, i32) {
    %c0_i32 = arith.constant 0 : i32
    %c0_i32_0 = arith.constant 0 : i32
    %c0_i32_1 = arith.constant 0 : i32
    return %c0_i32, %c0_i32_0 : i32, i32
  }
  func.func @transform_2(%arg0: i32) -> (i32, i32) {
    %c0_i32 = arith.constant 0 : i32
    %c0_i32_0 = arith.constant 0 : i32
    %c0_i32_1 = arith.constant 0 : i32
    return %c0_i32, %c0_i32_0 : i32, i32
  }
  func.func @transform_3(%arg0: i32) -> (i32, i32) {
    %c0_i32 = arith.constant 0 : i32
    %c0_i32_0 = arith.constant 0 : i32
    %c0_i32_1 = arith.constant 0 : i32
    return %c0_i32, %c0_i32_0 : i32, i32
  }
  func.func @transform_4(%arg0: i32) -> (i32, i32) {
    %c0_i32 = arith.constant 0 : i32
    %c0_i32_0 = arith.constant 0 : i32
    %c0_i32_1 = arith.constant 0 : i32
    return %c0_i32, %c0_i32_0 : i32, i32
  }
  func.func @transform_5(%arg0: i32) -> (i32, i32) {
    %c0_i32 = arith.constant 0 : i32
    %c0_i32_0 = arith.constant 0 : i32
    return %arg0, %c0_i32 : i32, i32
  }
}

</mosaic_0001>

<llo_original>
// kernel: tpu_custom_call.1
$region0: #{tpu_custom_call.1}
  #allocation0 [shape = 'u32[]', space=smem, size = 0x4, offset = 0x4, fixed_abs, tag = 'smem constant byte address 0x4 - core index']
  #allocation1 [shape = 'u32[144,128]{1,0:T(1,128)}', space=vmem, size = 0x12000, scoped, tag = 'internal scratch']
  %s0 = inlined_call_operand.vmem [shape: f32[16,60], index: 0, kind: input, shape index: {}]
  %s1 = inlined_call_operand.vmem [shape: bf16[60,256], index: 1, kind: input, shape index: {}]
  %s2 = inlined_call_operand.vmem [shape: f32[1,256], index: 2, kind: input, shape index: {}]
  %s3 = inlined_call_operand.vmem [shape: bf16[256,60], index: 3, kind: input, shape index: {}]
  %s4 = inlined_call_operand.vmem [shape: f32[1,60], index: 4, kind: input, shape index: {}]
  %s5 = inlined_call_operand.hbm [shape: f32[16,60], index: 5, kind: output, shape index: {}]
  %s6 = sld [smem:[#allocation0]]
  $region30: #{tpu_custom_call.1} parent=0
    _
  %s8 = ssub.s32 1, %s6
  %s9 = scalar_select 0, %s8, %s6
  $region1: #{tpu_custom_call.1} parent=0
    #allocation2 [shape = 'u8[8192]{0}', space=vmem, size = 0x2000, scoped, tag = 'output window, operand 0, single buffered']
    #allocation3 [shape = 's32[1]{0}', space=sflag, size = 0x4, scoped, tag = 'scoped memory for tpu_custom_call.1']
    %10 = vsyncpa [#allocation3], 0
    // Predicated region
    $region2: #{tpu_custom_call.1} parent=1 // pred_check
      _
    $region3: #{tpu_custom_call.1} parent=1 // pred_check_branch
      %12 = sbr.rel (0) target = $region5
    $region4: #{tpu_custom_call.1} parent=1 // pred_region
      _
    $region5: #{tpu_custom_call.1} parent=1 // pred_fallthru
      _
    // Predicated region
    $region6: #{tpu_custom_call.1} parent=1 // pred_check
      _
    $region7: #{tpu_custom_call.1} parent=1 // pred_check_branch
      %14 = sbr.rel (0) target = $region9
    $region8: #{tpu_custom_call.1} parent=1 // pred_region
      _
    $region9: #{tpu_custom_call.1} parent=1 // pred_fallthru
      _
    // Predicated region
    $region10: #{tpu_custom_call.1} parent=1 // pred_check
      _
    $region11: #{tpu_custom_call.1} parent=1 // pred_check_branch
      %16 = sbr.rel (0) target = $region13
    $region12: #{tpu_custom_call.1} parent=1 // pred_region
      _
    $region13: #{tpu_custom_call.1} parent=1 // pred_fallthru
      _
    // Predicated region
    $region14: #{tpu_custom_call.1} parent=1 // pred_check
      _
    $region15: #{tpu_custom_call.1} parent=1 // pred_check_branch
      %18 = sbr.rel (0) target = $region17
    $region16: #{tpu_custom_call.1} parent=1 // pred_region
      _
    $region17: #{tpu_custom_call.1} parent=1 // pred_fallthru
      _
    // Predicated region
    $region18: #{tpu_custom_call.1} parent=1 // pred_check
      _
    $region19: #{tpu_custom_call.1} parent=1 // pred_check_branch
      %20 = sbr.rel (0) target = $region21
    $region20: #{tpu_custom_call.1} parent=1 // pred_region
      _
    $region21: #{tpu_custom_call.1} parent=1 // pred_fallthru
      _
    %v22 = vld [vmem:[%s0] sm:$0xff]
    %v23 = vld [vmem:[%s0 + $0x8] sm:$0xff]
    %v24 = vpack.c.bf16 %v23, %v22
    %v25 = vld [vmem:[%s1] sm:$0xff]
    %v26 = vld [vmem:[%s1 + $0x8] sm:$0xff]
    %v27 = vld [vmem:[%s1 + $0x10] sm:$0xff]
    %v28 = vld [vmem:[%s1 + $0x18] sm:$0xff]
    %v29 = vld [vmem:[%s1 + $0x20] sm:$0xff]
    %v30 = vld [vmem:[%s1 + $0x28] sm:$0xff]
    %v31 = vld [vmem:[%s1 + $0x30] sm:$0xff]
    %v32 = vld [vmem:[%s1 + $0x38] sm:$0x33]
    %v33 = vld [vmem:[%s2] sm:$0x3]
    %v35 = vlaneseq
    %v36 = vshrl.u32 %v35, 7
    %v37 = vsub.s32 0, %v36
    %v38 = vrot.slane %v33, %v37
    %v39 = vlaneseq
    %v40 = vshrl.u32 %v39, 7
    %v41 = vsub.s32 1, %v40
    %v42 = vrot.slane %v33, %v41
    %v53 = vunpack.c.l.b16 %v25
    %v54 = vunpack.c.h.b16 %v25
    %v55 = vunpack.c.l.b16 %v26
    %v56 = vunpack.c.h.b16 %v26
    %v57 = vunpack.c.l.b16 %v27
    %v58 = vunpack.c.h.b16 %v27
    %v59 = vunpack.c.l.b16 %v28
    %v60 = vunpack.c.h.b16 %v28
    %v61 = vunpack.c.l.b16 %v29
    %v62 = vunpack.c.h.b16 %v29
    %v63 = vunpack.c.l.b16 %v30
    %v64 = vunpack.c.h.b16 %v30
    %v65 = vunpack.c.l.b16 %v31
    %v66 = vunpack.c.h.b16 %v31
    %v67 = vunpack.c.l.b16 %v32
    %v68 = vunpack.c.h.b16 %v32
    %v69 = vpack.c.b16 %v55, %v53
    %v70 = vpack.c.b16 %v56, %v54
    %v71 = vpack.c.b16 %v59, %v57
    %v72 = vpack.c.b16 %v60, %v58
    %v73 = vpack.c.b16 %v63, %v61
    %v74 = vpack.c.b16 %v64, %v62
    %v75 = vpack.c.b16 %v67, %v65
    %v76 = vpack.c.b16 %v68, %v66
    %vm83 = vcmask 490496
    %v85 = vsel %vm83, %v24, 0
    %vm87 = vcmask 1045504
    %v89 = vsel %vm87, %v75, 0
    %v92 = vsel %vm87, %v76, 0
    %94 = vmatprep.subr.bf16.mxu0 0
    %95 = vmatpush1.bf16.msra.mxu0 0
    %96 = vmatprep.subr.bf16.mxu0 0
    %97 = vmatpush1.bf16.msra.mxu0 0
    %98 = vmatprep.subr.bf16.mxu0 0
    %99 = vmatpush1.bf16.msra.mxu0 0
    %100 = vmatprep.subr.bf16.mxu0 0
    %101 = vmatpush1.bf16.msra.mxu0 0
    %102 = vmatprep.subr.bf16.mxu0 %v92
    %103 = vmatpush1.bf16.msra.mxu0 %v89
    %104 = vmatprep.subr.bf16.mxu0 %v74
    %105 = vmatpush1.bf16.msra.mxu0 %v73
    %106 = vmatprep.subr.bf16.mxu0 %v72
    %107 = vmatpush1.bf16.msra.mxu0 %v71
    %108 = vmatprep.subr.bf16.mxu0 %v70
    %109 = vmatpush1.bf16.msra.mxu0 %v69
    %110 = vmatprep.subr.bf16.mxu0 0
    %111 = vmatpush2.bf16.msra.mxu0 0
    %112 = vmatprep.subr.bf16.mxu0 0
    %113 = vmatpush2.bf16.msra.mxu0 0
    %114 = vmatprep.subr.bf16.mxu0 0
    %115 = vmatpush2.bf16.msra.mxu0 0
    %116 = vmatprep.subr.bf16.mxu0 0
    %117 = vmatpush2.bf16.msra.mxu0 0
    %118 = vmatprep.subr.bf16.mxu0 0
    %119 = vmatpush2.bf16.msra.mxu0 0
    %120 = vmatprep.subr.bf16.mxu0 0
    %121 = vmatpush2.bf16.msra.mxu0 0
    %122 = vmatprep.subr.bf16.mxu0 0
    %123 = vmatpush2.bf16.msra.mxu0 0
    %124 = vmatprep.subr.bf16.mxu0 0
    %125 = vmatpush2.bf16.msra.mxu0 0
    %126 = vmatprep.mubr.bf16.mxu0 0
    %127 = vmatmul.mubr.bf16.gmra.mxu0 %v85
    %v128 = vpop.f32.mrf.mxu0
    %v129 = vadd.f32 %v38, %v128
    %v130 = vpop.f32.mrf.mxu0
    %v131 = vadd.f32 %v42, %v130
    %v132 = vpop.f32.mrf.mxu0
    %v133 = vadd.f32 %v38, %v132
    %v134 = vpop.f32.mrf.mxu0
    %v135 = vadd.f32 %v42, %v134
    %136 = vdwg.mxu0
    %v137 = vmax.f32 %v129, 0.0
    %v138 = vmax.f32 %v131, 0.0
    %v139 = vmax.f32 %v133, 0.0
    %v140 = vmax.f32 %v135, 0.0
    %v141 = vpack.c.bf16 %v139, %v137
    %v142 = vpack.c.bf16 %v140, %v138
    %v143 = vld [vmem:[%s3] sm:$0xf]
    %v144 = vld [vmem:[%s3 + $0x4] sm:$0xf]
    %v145 = vld [vmem:[%s3 + $0x8] sm:$0xf]
    %v146 = vld [vmem:[%s3 + $0xc] sm:$0xf]
    %v147 = vld [vmem:[%s3 + $0x10] sm:$0xf]
    %v148 = vld [vmem:[%s3 + $0x14] sm:$0xf]
    %v149 = vld [vmem:[%s3 + $0x18] sm:$0xf]
    %v150 = vld [vmem:[%s3 + $0x1c] sm:$0xf]
    %v151 = vld [vmem:[%s3 + $0x20] sm:$0xf]
    %v152 = vld [vmem:[%s3 + $0x24] sm:$0xf]
    %v153 = vld [vmem:[%s3 + $0x28] sm:$0xf]
    %v154 = vld [vmem:[%s3 + $0x2c] sm:$0xf]
    %v155 = vld [vmem:[%s3 + $0x30] sm:$0xf]
    %v156 = vld [vmem:[%s3 + $0x34] sm:$0xf]
    %v157 = vld [vmem:[%s3 + $0x38] sm:$0xf]
    %v158 = vld [vmem:[%s3 + $0x3c] sm:$0xf]
    %v159 = vld [vmem:[%s3 + $0x40] sm:$0xf]
    %v160 = vld [vmem:[%s3 + $0x44] sm:$0xf]
    %v161 = vld [vmem:[%s3 + $0x48] sm:$0xf]
    %v162 = vld [vmem:[%s3 + $0x4c] sm:$0xf]
    %v163 = vld [vmem:[%s3 + $0x50] sm:$0xf]
    %v164 = vld [vmem:[%s3 + $0x54] sm:$0xf]
    %v165 = vld [vmem:[%s3 + $0x58] sm:$0xf]
    %v166 = vld [vmem:[%s3 + $0x5c] sm:$0xf]
    %v167 = vld [vmem:[%s3 + $0x60] sm:$0xf]
    %v168 = vld [vmem:[%s3 + $0x64] sm:$0xf]
    %v169 = vld [vmem:[%s3 + $0x68] sm:$0xf]
    %v170 = vld [vmem:[%s3 + $0x6c] sm:$0xf]
    %v171 = vld [vmem:[%s3 + $0x70] sm:$0xf]
    %v172 = vld [vmem:[%s3 + $0x74] sm:$0xf]
    %v173 = vld [vmem:[%s3 + $0x78] sm:$0xf]
    %v174 = vld [vmem:[%s3 + $0x7c] sm:$0xf]
    %v175 = vld [vmem:[%s4] sm:$0x1]
    %v177 = vlaneseq
    %v178 = vshrl.u32 %v177, 7
    %v179 = vsub.s32 0, %v178
    %v180 = vrot.slane %v175, %v179
    %v214 = vunpack.c.l.b16 %v143
    %v215 = vunpack.c.l.b16 %v144
    %v216 = vunpack.c.l.b16 %v145
    %v217 = vunpack.c.l.b16 %v146
    %v218 = vunpack.c.l.b16 %v147
    %v219 = vunpack.c.l.b16 %v148
    %v220 = vunpack.c.l.b16 %v149
    %v221 = vunpack.c.l.b16 %v150
    %v222 = vunpack.c.l.b16 %v151
    %v223 = vunpack.c.l.b16 %v152
    %v224 = vunpack.c.l.b16 %v153
    %v225 = vunpack.c.l.b16 %v154
    %v226 = vunpack.c.l.b16 %v155
    %v227 = vunpack.c.l.b16 %v156
    %v228 = vunpack.c.l.b16 %v157
    %v229 = vunpack.c.l.b16 %v158
    %v230 = vunpack.c.l.b16 %v159
    %v231 = vunpack.c.l.b16 %v160
    %v232 = vunpack.c.l.b16 %v161
    %v233 = vunpack.c.l.b16 %v162
    %v234 = vunpack.c.l.b16 %v163
    %v235 = vunpack.c.l.b16 %v164
    %v236 = vunpack.c.l.b16 %v165
    %v237 = vunpack.c.l.b16 %v166
    %v238 = vunpack.c.l.b16 %v167
    %v239 = vunpack.c.l.b16 %v168
    %v240 = vunpack.c.l.b16 %v169
    %v241 = vunpack.c.l.b16 %v170
    %v242 = vunpack.c.l.b16 %v171
    %v243 = vunpack.c.l.b16 %v172
    %v244 = vunpack.c.l.b16 %v173
    %v245 = vunpack.c.l.b16 %v174
    %v246 = vpack.c.b16 %v215, %v214
    %v247 = vpack.c.b16 %v217, %v216
    %v248 = vpack.c.b16 %v219, %v218
    %v249 = vpack.c.b16 %v221, %v220
    %v250 = vpack.c.b16 %v223, %v222
    %v251 = vpack.c.b16 %v225, %v224
    %v252 = vpack.c.b16 %v227, %v226
    %v253 = vpack.c.b16 %v229, %v228
    %v254 = vpack.c.b16 %v231, %v230
    %v255 = vpack.c.b16 %v233, %v232
    %v256 = vpack.c.b16 %v235, %v234
    %v257 = vpack.c.b16 %v237, %v236
    %v258 = vpack.c.b16 %v239, %v238
    %v259 = vpack.c.b16 %v241, %v240
    %v260 = vpack.c.b16 %v243, %v242
    %v261 = vpack.c.b16 %v245, %v244
    %278 = vmatprep.subr.bf16.mxu0 0
    %279 = vmatpush1.bf16.msra.mxu0 %v253
    %280 = vmatprep.subr.bf16.mxu0 0
    %281 = vmatpush1.bf16.msra.mxu0 %v252
    %282 = vmatprep.subr.bf16.mxu0 0
    %283 = vmatpush1.bf16.msra.mxu0 %v251
    %284 = vmatprep.subr.bf16.mxu0 0
    %285 = vmatpush1.bf16.msra.mxu0 %v250
    %286 = vmatprep.subr.bf16.mxu0 0
    %287 = vmatpush1.bf16.msra.mxu0 %v249
    %288 = vmatprep.subr.bf16.mxu0 0
    %289 = vmatpush1.bf16.msra.mxu0 %v248
    %290 = vmatprep.subr.bf16.mxu0 0
    %291 = vmatpush1.bf16.msra.mxu0 %v247
    %292 = vmatprep.subr.bf16.mxu0 0
    %293 = vmatpush1.bf16.msra.mxu0 %v246
    %294 = vmatprep.subr.bf16.mxu0 0
    %295 = vmatpush2.bf16.msra.mxu0 %v261
    %296 = vmatprep.subr.bf16.mxu0 0
    %297 = vmatpush2.bf16.msra.mxu0 %v260
    %298 = vmatprep.subr.bf16.mxu0 0
    %299 = vmatpush2.bf16.msra.mxu0 %v259
    %300 = vmatprep.subr.bf16.mxu0 0
    %301 = vmatpush2.bf16.msra.mxu0 %v258
    %302 = vmatprep.subr.bf16.mxu0 0
    %303 = vmatpush2.bf16.msra.mxu0 %v257
    %304 = vmatprep.subr.bf16.mxu0 0
    %305 = vmatpush2.bf16.msra.mxu0 %v256
    %306 = vmatprep.subr.bf16.mxu0 0
    %307 = vmatpush2.bf16.msra.mxu0 %v255
    %308 = vmatprep.subr.bf16.mxu0 0
    %309 = vmatpush2.bf16.msra.mxu0 %v254
    %310 = vmatprep.mubr.bf16.mxu0 %v142
    %311 = vmatmul.mubr.bf16.gmra.mxu0 %v141
    %v312 = vpop.f32.mrf.mxu0
    %v313 = vadd.f32 %v180, %v312
    %v314 = vpop.f32.mrf.mxu0
    %v315 = vpop.f32.mrf.mxu0
    %v316 = vadd.f32 %v180, %v315
    %v317 = vpop.f32.mrf.mxu0
    %318 = vdwg.mxu0
    %319 = vst.msk [vmem:[#allocation2] sm:$0xff] %vm83, %v313
    %320 = vst.msk [vmem:[#allocation2 + $0x8] sm:$0xff] %vm83, %v316
    // Predicated region
    $region22: #{tpu_custom_call.1} parent=1 // pred_check
      _
    $region23: #{tpu_custom_call.1} parent=1 // pred_check_branch
      %322 = sbr.rel (0) target = $region25
    $region24: #{tpu_custom_call.1} parent=1 // pred_region
      %s324 = ssub.s32 256, 256
      %325 = vsyncadd [#allocation3], %s324
      %s326 = sshll.u32 [#allocation2], 4
      %s327 = int_to_ptr.vmem [resolvable:$true] %s326
      %332 = dma.vmem_to_hbm [thread:$0]  %s327, 256, %s5, [#allocation3], 128, 128, 8
    $region25: #{tpu_custom_call.1} parent=1 // pred_fallthru
      _
    // Predicated region
    $region26: #{tpu_custom_call.1} parent=1 // pred_check
      _
    $region27: #{tpu_custom_call.1} parent=1 // pred_check_branch
      %334 = sbr.rel (0) target = $region29
    $region28: #{tpu_custom_call.1} parent=1 // pred_region
      %335 = dma.done [#allocation3], 256
    $region29: #{tpu_custom_call.1} parent=1 // pred_fallthru
      _
    %336 = vsyncpa [#allocation3], 1

</llo_original>
